<compile_context>
chip_gen: v5e
topology: v5e:2x2
jax: 0.10.0
libtpu: 0.0.40
codegen_flags: <defaults>
</compile_context>

<pallas_src>
import math

import jax
import jax.numpy as jnp
import numpy as np
from jax.experimental import pallas as pl
from jax.experimental.pallas import tpu as pltpu

EMBED_DIM = 32          # embed_dim
C = 22                  # input_dim (mixed_heuristic=False -> c = 22)
C_AUG = C + 1           # + constant-1 row for the folded layer-0 bias
NEG_SLOPE = 0.01        # nn.LeakyReLU() default negative_slope


def _leaky_relu(x):
    return jnp.where(x > 0, x, NEG_SLOPE * x)


def _round_up(v, m):
    return ((v + m - 1) // m) * m


def _mlp_kernel(xt_ref, w0_ref, w1_ref, b1_ref, w2_ref, b2_ref, w3_ref, o_ref):
    """Feature-major MLP on one (C_AUG, tile) column block.

    xt_ref : (23, tile)   [features ; ones] with N on the lane axis
    w0_ref : (32, 23)     layer-0 weight with bias folded as last column
    w1/w2  : (32, 32)     hidden weights,  b1/b2: (32, 1) f32 biases
    w3_ref : (1, 32)      final bias-free weight
    o_ref  : (1, tile) f32 lane-dense output row
    """
    cdt = xt_ref.dtype  # MXU input dtype (f32 or bf16); math below stays f32

    # layer 0: bias folded into the matmul via the ones row
    h = jnp.dot(w0_ref[...], xt_ref[...], preferred_element_type=jnp.float32)
    h = _leaky_relu(h).astype(cdt)                       # (32, tile)

    h = jnp.dot(w1_ref[...], h,
                preferred_element_type=jnp.float32) + b1_ref[...]
    h = _leaky_relu(h).astype(cdt)

    h = jnp.dot(w2_ref[...], h,
                preferred_element_type=jnp.float32) + b2_ref[...]
    h = _leaky_relu(h).astype(cdt)

    # final Linear(32, 1, bias=False): (1,32) @ (32,tile) -> lane-dense (1,tile)
    o_ref[...] = jnp.dot(w3_ref[...], h, preferred_element_type=jnp.float32)


def init_params(key):
    """Synthetic init mimicking CVRPActorPairs.init_weights:
       kaiming_uniform_(weight) (a=0, fan_in -> bound=sqrt(6/fan_in)),
       bias.fill_(0.01).  Weights kept in PyTorch (out_dim, in_dim) layout."""
    dims = [(EMBED_DIM, C), (EMBED_DIM, EMBED_DIM), (EMBED_DIM, EMBED_DIM),
            (1, EMBED_DIM)]
    params = {}
    keys = jax.random.split(key, len(dims))
    for i, ((fan_out, fan_in), k) in enumerate(zip(dims, keys)):
        bound = math.sqrt(6.0 / fan_in)
        params[f"w{i}"] = jax.random.uniform(
            k, (fan_out, fan_in), jnp.float32, -bound, bound)
        if i < len(dims) - 1:            # last Linear has bias=False
            params[f"b{i}"] = jnp.full((fan_out,), 0.01, jnp.float32)
    return params


def cvrp_actor_pairs_forward(state, params, *, tile_n=8192,
                             compute_dtype=jnp.bfloat16):
    """Pallas implementation of CVRPActorPairs.forward: pair_logits = net(state).

    tile_n        : max lane-tile size (multiple of 128).  8192 default; larger
                    values (16384-32768) can be used on v7x.
    compute_dtype : MXU input dtype (jnp.bfloat16 or jnp.float32).  Accumulation,
                    bias-add and LeakyReLU always stay in float32.
    """
    orig_shape = state.shape
    assert orig_shape[-1] == C, f"expected last dim {C}, got {orig_shape[-1]}"
    n = 1
    for d in orig_shape[:-1]:
        n *= int(d)
    if n == 0:                                            # empty-input guard
        return jnp.zeros((*orig_shape[:-1], 1), jnp.float32)

    # Feature-major layout with the bias-ones row appended; transpose + concat
    # + cast (+ small pad to 128) fuse into one XLA copy before the kernel.
    x = state.reshape(n, C)
    xt = jnp.concatenate(
        [x.T, jnp.ones((1, n), x.dtype)], axis=0).astype(compute_dtype)  # (23, N)

    n128 = _round_up(n, 128)                              # pad only to 128, not tile
    if n128 != n:
        xt = jnp.pad(xt, ((0, 0), (0, n128 - n)))

    tile_n = _round_up(max(int(tile_n), 128), 128)
    if n128 >= 2 * 128:
        # keep >= 2 parallel grid steps so both v7x TensorCores get work
        tile = min(tile_n, _round_up(pl.cdiv(n128, 2), 128))
    else:
        tile = n128
    grid = (pl.cdiv(n128, tile),)                         # ragged last block OK

    w0 = jnp.concatenate(                                 # fold b0 as last column
        [params["w0"], params["b0"].reshape(EMBED_DIM, 1)],
        axis=1).astype(compute_dtype)                     # (32, 23)
    w1 = params["w1"].astype(compute_dtype)
    w2 = params["w2"].astype(compute_dtype)
    w3 = params["w3"].astype(compute_dtype)
    b1 = params["b1"].astype(jnp.float32).reshape(EMBED_DIM, 1)
    b2 = params["b2"].astype(jnp.float32).reshape(EMBED_DIM, 1)

    full = lambda i: (0, 0)      # weights / biases: same block every step

    out = pl.pallas_call(
        _mlp_kernel,
        out_shape=jax.ShapeDtypeStruct((1, n128), jnp.float32),
        grid_spec=pltpu.PrefetchScalarGridSpec(
            num_scalar_prefetch=0,
            grid=grid,
            in_specs=[
                pl.BlockSpec((C_AUG, tile), lambda i: (0, i)),      # x^T tile
                pl.BlockSpec((EMBED_DIM, C_AUG), full),             # w0|b0 (32,23)
                pl.BlockSpec((EMBED_DIM, EMBED_DIM), full),         # w1
                pl.BlockSpec((EMBED_DIM, 1), full),                 # b1
                pl.BlockSpec((EMBED_DIM, EMBED_DIM), full),         # w2
                pl.BlockSpec((EMBED_DIM, 1), full),                 # b2
                pl.BlockSpec((1, EMBED_DIM), full),                 # w3 (1,32)
            ],
            out_specs=pl.BlockSpec((1, tile), lambda i: (0, i)),    # lane-dense
        ),
        compiler_params=pltpu.CompilerParams(
            dimension_semantics=("parallel",),
            vmem_limit_bytes=48 * 1024 * 1024),
    )(xt, w0, w1, b1, w2, b2, w3)

    out = out[0, :n]
    return out.reshape(*orig_shape[:-1], 1)


def _reference_forward(state, params, compute_dtype=jnp.float32):
    """Plain-JAX reference with the same dtype policy (f32 accumulation)."""
    x = state.reshape(-1, C).astype(compute_dtype)

    def layer(h, w, b):
        y = jnp.dot(h, w.astype(compute_dtype).T,
                    preferred_element_type=jnp.float32)
        if b is not None:
            y = y + b[None, :]
        return y

    h = _leaky_relu(layer(x, params["w0"], params["b0"])).astype(compute_dtype)
    h = _leaky_relu(layer(h, params["w1"], params["b1"])).astype(compute_dtype)
    h = _leaky_relu(layer(h, params["w2"], params["b2"])).astype(compute_dtype)
    h = layer(h, params["w3"], None)
    return h.reshape(*state.shape[:-1], 1)


if __name__ == "__main__":
    key = jax.random.PRNGKey(0)
    k_param, k1, k2, k3 = jax.random.split(key, 4)
    params = init_params(k_param)

    # small input, single tile, default bf16 MXU-input path
    state = jax.random.normal(k1, (2, 8, C), jnp.float32)
    out = jax.block_until_ready(cvrp_actor_pairs_forward(state, params))
    ref_bf16 = _reference_forward(state, params, compute_dtype=jnp.bfloat16)
    np.testing.assert_allclose(np.asarray(out), np.asarray(ref_bf16),
                               rtol=2e-2, atol=2e-2)
    assert out.shape == (2, 8, 1)

    # exact f32 path against the f32 reference
    out_f32 = jax.block_until_ready(
        cvrp_actor_pairs_forward(state, params, compute_dtype=jnp.float32))
    ref_f32 = _reference_forward(state, params)
    np.testing.assert_allclose(np.asarray(out_f32), np.asarray(ref_f32),
                               rtol=1e-5, atol=1e-5)

    # multi-step grid + ragged tail (n=900 -> 1024 lanes, tile 256 -> 4 steps)
    state2 = jax.random.normal(k2, (3, 300, C), jnp.float32)
    out2 = jax.block_until_ready(
        cvrp_actor_pairs_forward(state2, params, tile_n=256,
                                 compute_dtype=jnp.float32))
    ref2 = _reference_forward(state2, params)
    np.testing.assert_allclose(np.asarray(out2), np.asarray(ref2),
                               rtol=1e-5, atol=1e-5)
    assert out2.shape == (3, 300, 1)

    # default big-tile config: ">=2 grid steps" logic kicks in (n=6000 -> 2 steps)
    state3 = jax.random.normal(k3, (4, 1500, C), jnp.float32)
    out3 = jax.block_until_ready(cvrp_actor_pairs_forward(state3, params))
    ref3 = _reference_forward(state3, params, compute_dtype=jnp.bfloat16)
    np.testing.assert_allclose(np.asarray(out3), np.asarray(ref3),
                               rtol=2e-2, atol=2e-2)
    assert out3.shape == (4, 1500, 1)

    print("KERNEL_OK")
</pallas_src>

<mosaic_0001>
module attributes {stable_mosaic.version = 11 : i64} {
  func.func @_mlp_kernel(%arg0: i32, %arg1: memref<23x128xbf16, #tpu.memory_space<vmem>>, %arg2: memref<32x23xbf16, #tpu.memory_space<vmem>>, %arg3: memref<32x32xbf16, #tpu.memory_space<vmem>>, %arg4: memref<32x1xf32, #tpu.memory_space<vmem>>, %arg5: memref<32x32xbf16, #tpu.memory_space<vmem>>, %arg6: memref<32x1xf32, #tpu.memory_space<vmem>>, %arg7: memref<1x32xbf16, #tpu.memory_space<vmem>>, %arg8: memref<1x128xf32, #tpu.memory_space<vmem>>) attributes {dimension_semantics = [#tpu.dimension_semantics<parallel>], iteration_bounds = array<i64: 1>, scalar_prefetch = 0 : i64, scratch_operands = 0 : i64, tpu.core_type = #tpu.core_type<tc>, window_params = [{transform_indices = @transform_0, window_bounds = array<i64: 23, 128>}, {pipeline_mode = #tpu.pipeline_mode<synchronous>, transform_indices = @transform_1, window_bounds = array<i64: 32, 23>}, {pipeline_mode = #tpu.pipeline_mode<synchronous>, transform_indices = @transform_2, window_bounds = array<i64: 32, 32>}, {pipeline_mode = #tpu.pipeline_mode<synchronous>, transform_indices = @transform_3, window_bounds = array<i64: 32, 1>}, {pipeline_mode = #tpu.pipeline_mode<synchronous>, transform_indices = @transform_4, window_bounds = array<i64: 32, 32>}, {pipeline_mode = #tpu.pipeline_mode<synchronous>, transform_indices = @transform_5, window_bounds = array<i64: 32, 1>}, {pipeline_mode = #tpu.pipeline_mode<synchronous>, transform_indices = @transform_6, window_bounds = array<i64: 1, 32>}, {transform_indices = @transform_7, window_bounds = array<i64: 1, 128>}]} {
    %c0 = arith.constant 0 : index
    %c0_0 = arith.constant 0 : index
    %0 = vector.load %arg2[%c0, %c0_0] : memref<32x23xbf16, #tpu.memory_space<vmem>>, vector<32x23xbf16>
    %c0_1 = arith.constant 0 : index
    %c0_2 = arith.constant 0 : index
    %1 = vector.load %arg1[%c0_1, %c0_2] : memref<23x128xbf16, #tpu.memory_space<vmem>>, vector<23x128xbf16>
    %cst = arith.constant dense<0.000000e+00> : vector<32x128xf32>
    %2 = tpu.matmul %0, %1, %cst {dimension_numbers = #tpu.dot_dimension_numbers<[1], [0], [0], [1], [0, 0, 1, 1], [], []>} : vector<32x23xbf16>, vector<23x128xbf16>, vector<32x128xf32> -> vector<32x128xf32>
    %cst_3 = arith.constant 0.000000e+00 : f32
    %3 = vector.broadcast %cst_3 : f32 to vector<32x128xf32>
    %4 = arith.cmpf ogt, %2, %3 : vector<32x128xf32>
    %cst_4 = arith.constant 0.00999999977 : f32
    %5 = vector.broadcast %cst_4 : f32 to vector<32x128xf32>
    %6 = arith.mulf %5, %2 : vector<32x128xf32>
    %7 = arith.select %4, %2, %6 : vector<32x128xi1>, vector<32x128xf32>
    %8 = arith.truncf %7 : vector<32x128xf32> to vector<32x128xbf16>
    %c0_5 = arith.constant 0 : index
    %c0_6 = arith.constant 0 : index
    %9 = vector.load %arg3[%c0_5, %c0_6] : memref<32x32xbf16, #tpu.memory_space<vmem>>, vector<32x32xbf16>
    %cst_7 = arith.constant dense<0.000000e+00> : vector<32x128xf32>
    %10 = tpu.matmul %9, %8, %cst_7 {dimension_numbers = #tpu.dot_dimension_numbers<[1], [0], [0], [1], [0, 0, 1, 1], [], []>} : vector<32x32xbf16>, vector<32x128xbf16>, vector<32x128xf32> -> vector<32x128xf32>
    %c0_8 = arith.constant 0 : index
    %c0_9 = arith.constant 0 : index
    %11 = vector.load %arg4[%c0_8, %c0_9] : memref<32x1xf32, #tpu.memory_space<vmem>>, vector<32x1xf32>
    %12 = vector.broadcast %11 : vector<32x1xf32> to vector<32x128xf32>
    %13 = arith.addf %10, %12 : vector<32x128xf32>
    %cst_10 = arith.constant 0.000000e+00 : f32
    %14 = vector.broadcast %cst_10 : f32 to vector<32x128xf32>
    %15 = arith.cmpf ogt, %13, %14 : vector<32x128xf32>
    %cst_11 = arith.constant 0.00999999977 : f32
    %16 = vector.broadcast %cst_11 : f32 to vector<32x128xf32>
    %17 = arith.mulf %16, %13 : vector<32x128xf32>
    %18 = arith.select %15, %13, %17 : vector<32x128xi1>, vector<32x128xf32>
    %19 = arith.truncf %18 : vector<32x128xf32> to vector<32x128xbf16>
    %c0_12 = arith.constant 0 : index
    %c0_13 = arith.constant 0 : index
    %20 = vector.load %arg5[%c0_12, %c0_13] : memref<32x32xbf16, #tpu.memory_space<vmem>>, vector<32x32xbf16>
    %cst_14 = arith.constant dense<0.000000e+00> : vector<32x128xf32>
    %21 = tpu.matmul %20, %19, %cst_14 {dimension_numbers = #tpu.dot_dimension_numbers<[1], [0], [0], [1], [0, 0, 1, 1], [], []>} : vector<32x32xbf16>, vector<32x128xbf16>, vector<32x128xf32> -> vector<32x128xf32>
    %c0_15 = arith.constant 0 : index
    %c0_16 = arith.constant 0 : index
    %22 = vector.load %arg6[%c0_15, %c0_16] : memref<32x1xf32, #tpu.memory_space<vmem>>, vector<32x1xf32>
    %23 = vector.broadcast %22 : vector<32x1xf32> to vector<32x128xf32>
    %24 = arith.addf %21, %23 : vector<32x128xf32>
    %cst_17 = arith.constant 0.000000e+00 : f32
    %25 = vector.broadcast %cst_17 : f32 to vector<32x128xf32>
    %26 = arith.cmpf ogt, %24, %25 : vector<32x128xf32>
    %cst_18 = arith.constant 0.00999999977 : f32
    %27 = vector.broadcast %cst_18 : f32 to vector<32x128xf32>
    %28 = arith.mulf %27, %24 : vector<32x128xf32>
    %29 = arith.select %26, %24, %28 : vector<32x128xi1>, vector<32x128xf32>
    %30 = arith.truncf %29 : vector<32x128xf32> to vector<32x128xbf16>
    %c0_19 = arith.constant 0 : index
    %c0_20 = arith.constant 0 : index
    %31 = vector.load %arg7[%c0_19, %c0_20] : memref<1x32xbf16, #tpu.memory_space<vmem>>, vector<1x32xbf16>
    %cst_21 = arith.constant dense<0.000000e+00> : vector<1x128xf32>
    %32 = tpu.matmul %31, %30, %cst_21 {dimension_numbers = #tpu.dot_dimension_numbers<[1], [0], [0], [1], [0, 0, 1, 1], [], []>} : vector<1x32xbf16>, vector<32x128xbf16>, vector<1x128xf32> -> vector<1x128xf32>
    %c0_22 = arith.constant 0 : index
    %c0_23 = arith.constant 0 : index
    %33 = vector.load %arg8[%c0_22, %c0_23] : memref<1x128xf32, #tpu.memory_space<vmem>>, vector<1x128xf32>
    tpu.vector_store %arg8[%c0_22, %c0_23], %32 {strides = array<i32>} : memref<1x128xf32, #tpu.memory_space<vmem>>, vector<1x128xf32>,
    return
  }
  func.func @transform_0(%arg0: i32) -> (i32, i32) {
    %c0_i32 = arith.constant 0 : i32
    %c0_i32_0 = arith.constant 0 : i32
    return %c0_i32, %arg0 : i32, i32
  }
  func.func @transform_1(%arg0: i32) -> (i32, i32) {
    %c0_i32 = arith.constant 0 : i32
    %c0_i32_0 = arith.constant 0 : i32
    %c0_i32_1 = arith.constant 0 : i32
    return %c0_i32, %c0_i32_0 : i32, i32
  }
  func.func @transform_2(%arg0: i32) -> (i32, i32) {
    %c0_i32 = arith.constant 0 : i32
    %c0_i32_0 = arith.constant 0 : i32
    %c0_i32_1 = arith.constant 0 : i32
    return %c0_i32, %c0_i32_0 : i32, i32
  }
  func.func @transform_3(%arg0: i32) -> (i32, i32) {
    %c0_i32 = arith.constant 0 : i32
    %c0_i32_0 = arith.constant 0 : i32
    %c0_i32_1 = arith.constant 0 : i32
    return %c0_i32, %c0_i32_0 : i32, i32
  }
  func.func @transform_4(%arg0: i32) -> (i32, i32) {
    %c0_i32 = arith.constant 0 : i32
    %c0_i32_0 = arith.constant 0 : i32
    %c0_i32_1 = arith.constant 0 : i32
    return %c0_i32, %c0_i32_0 : i32, i32
  }
  func.func @transform_5(%arg0: i32) -> (i32, i32) {
    %c0_i32 = arith.constant 0 : i32
    %c0_i32_0 = arith.constant 0 : i32
    %c0_i32_1 = arith.constant 0 : i32
    return %c0_i32, %c0_i32_0 : i32, i32
  }
  func.func @transform_6(%arg0: i32) -> (i32, i32) {
    %c0_i32 = arith.constant 0 : i32
    %c0_i32_0 = arith.constant 0 : i32
    %c0_i32_1 = arith.constant 0 : i32
    return %c0_i32, %c0_i32_0 : i32, i32
  }
  func.func @transform_7(%arg0: i32) -> (i32, i32) {
    %c0_i32 = arith.constant 0 : i32
    %c0_i32_0 = arith.constant 0 : i32
    return %c0_i32, %arg0 : i32, i32
  }
}

</mosaic_0001>

<llo_original>
// kernel: tpu_custom_call.1
$region0: #{tpu_custom_call.1}
  #allocation0 [shape = 'u32[]', space=smem, size = 0x4, offset = 0x4, fixed_abs, tag = 'smem constant byte address 0x4 - core index']
  #allocation1 [shape = 'u32[72,128]{1,0:T(1,128)}', space=vmem, size = 0x9000, scoped, tag = 'internal scratch']
  %s0 = inlined_call_operand.vmem [shape: bf16[23,128], index: 0, kind: input, shape index: {}]
  %s1 = inlined_call_operand.vmem [shape: bf16[32,23], index: 1, kind: input, shape index: {}]
  %s2 = inlined_call_operand.vmem [shape: bf16[32,32], index: 2, kind: input, shape index: {}]
  %s3 = inlined_call_operand.vmem [shape: f32[32,1], index: 3, kind: input, shape index: {}]
  %s4 = inlined_call_operand.vmem [shape: bf16[32,32], index: 4, kind: input, shape index: {}]
  %s5 = inlined_call_operand.vmem [shape: f32[32,1], index: 5, kind: input, shape index: {}]
  %s6 = inlined_call_operand.vmem [shape: bf16[1,32], index: 6, kind: input, shape index: {}]
  %s7 = inlined_call_operand.hbm [shape: f32[1,128], index: 7, kind: output, shape index: {}]
  %s8 = sld [smem:[#allocation0]]
  $region38: #{tpu_custom_call.1} parent=0
    _
  %s10 = ssub.s32 1, %s8
  %s11 = scalar_select 0, %s10, %s8
  $region1: #{tpu_custom_call.1} parent=0
    #allocation2 [shape = 'u8[512]{0}', space=vmem, size = 0x400, scoped, tag = 'output window, operand 0, single buffered']
    #allocation3 [shape = 's32[1]{0}', space=sflag, size = 0x4, scoped, tag = 'scoped memory for tpu_custom_call.1']
    %12 = vsyncpa [#allocation3], 0
    // Predicated region
    $region2: #{tpu_custom_call.1} parent=1 // pred_check
      _
    $region3: #{tpu_custom_call.1} parent=1 // pred_check_branch
      %14 = sbr.rel (0) target = $region5
    $region4: #{tpu_custom_call.1} parent=1 // pred_region
      _
    $region5: #{tpu_custom_call.1} parent=1 // pred_fallthru
      _
    // Predicated region
    $region6: #{tpu_custom_call.1} parent=1 // pred_check
      _
    $region7: #{tpu_custom_call.1} parent=1 // pred_check_branch
      %16 = sbr.rel (0) target = $region9
    $region8: #{tpu_custom_call.1} parent=1 // pred_region
      _
    $region9: #{tpu_custom_call.1} parent=1 // pred_fallthru
      _
    // Predicated region
    $region10: #{tpu_custom_call.1} parent=1 // pred_check
      _
    $region11: #{tpu_custom_call.1} parent=1 // pred_check_branch
      %18 = sbr.rel (0) target = $region13
    $region12: #{tpu_custom_call.1} parent=1 // pred_region
      _
    $region13: #{tpu_custom_call.1} parent=1 // pred_fallthru
      _
    // Predicated region
    $region14: #{tpu_custom_call.1} parent=1 // pred_check
      _
    $region15: #{tpu_custom_call.1} parent=1 // pred_check_branch
      %20 = sbr.rel (0) target = $region17
    $region16: #{tpu_custom_call.1} parent=1 // pred_region
      _
    $region17: #{tpu_custom_call.1} parent=1 // pred_fallthru
      _
    // Predicated region
    $region18: #{tpu_custom_call.1} parent=1 // pred_check
      _
    $region19: #{tpu_custom_call.1} parent=1 // pred_check_branch
      %22 = sbr.rel (0) target = $region21
    $region20: #{tpu_custom_call.1} parent=1 // pred_region
      _
    $region21: #{tpu_custom_call.1} parent=1 // pred_fallthru
      _
    // Predicated region
    $region22: #{tpu_custom_call.1} parent=1 // pred_check
      _
    $region23: #{tpu_custom_call.1} parent=1 // pred_check_branch
      %24 = sbr.rel (0) target = $region25
    $region24: #{tpu_custom_call.1} parent=1 // pred_region
      _
    $region25: #{tpu_custom_call.1} parent=1 // pred_fallthru
      _
    // Predicated region
    $region26: #{tpu_custom_call.1} parent=1 // pred_check
      _
    $region27: #{tpu_custom_call.1} parent=1 // pred_check_branch
      %26 = sbr.rel (0) target = $region29
    $region28: #{tpu_custom_call.1} parent=1 // pred_region
      _
    $region29: #{tpu_custom_call.1} parent=1 // pred_fallthru
      _
    %v28 = vld [vmem:[%s1] sm:$0xf]
    %v29 = vld [vmem:[%s1 + $0x4] sm:$0xf]
    %v30 = vld [vmem:[%s1 + $0x8] sm:$0xf]
    %v31 = vld [vmem:[%s1 + $0xc] sm:$0xf]
    %v32 = vld [vmem:[%s0] sm:$0xf]
    %v33 = vld [vmem:[%s0 + $0x4] sm:$0xf]
    %v34 = vld [vmem:[%s0 + $0x8] sm:$0xf]
    %v39 = vunpack.c.l.b16 %v28
    %v40 = vunpack.c.l.b16 %v29
    %v41 = vunpack.c.l.b16 %v30
    %v42 = vunpack.c.l.b16 %v31
    %v43 = vpack.c.b16 %v40, %v39
    %v44 = vpack.c.b16 %v42, %v41
    %v48 = vunpack.c.l.b16 %v32
    %v49 = vunpack.c.l.b16 %v33
    %v50 = vunpack.c.l.b16 %v34
    %v51 = vpack.c.b16 %v49, %v48
    %v52 = vpack.c.b16 %v50, %v50
    %vm54 = vcmask 187392
    %v56 = vsel %vm54, %v43, 0
    %v59 = vsel %vm54, %v44, 0
    %vm61 = vcmask 1042432
    %vm62 = vcmask 1043456
    %v63 = vsel %vm61, 4294967295, 65535
    %v64 = vsel %vm62, %v63, 0
    %v66 = vand.u32 %v52, %v64
    %68 = vmatpush.bf16.msra.mxu0 0
    %69 = vmatpush.bf16.msra.mxu0 0
    %70 = vmatpush.bf16.msra.mxu0 0
    %71 = vmatpush.bf16.msra.mxu0 0
    %72 = vmatpush.bf16.msra.mxu0 0
    %73 = vmatpush.bf16.msra.mxu0 0
    %74 = vmatpush.bf16.msra.mxu0 %v66
    %75 = vmatpush.bf16.msra.mxu0 %v51
    %76 = vmatmul.bf16.gmra.mxu0 %v56
    %v77 = vpop.f32.mrf.mxu0
    %v78 = vadd.f32 0.0, %v77
    %v79 = vpop.f32.mrf.mxu0
    %v80 = vadd.f32 0.0, %v79
    %81 = vmatmul.bf16.gmra.mxu0 %v59
    %v82 = vpop.f32.mrf.mxu0
    %v83 = vadd.f32 0.0, %v82
    %v84 = vpop.f32.mrf.mxu0
    %v85 = vadd.f32 0.0, %v84
    %86 = vdwg.mxu0
    %vm87 = vcmp.gt.f32.partialorder %v78, 0.0
    %vm88 = vcmp.gt.f32.partialorder %v80, 0.0
    %vm89 = vcmp.gt.f32.partialorder %v83, 0.0
    %vm90 = vcmp.gt.f32.partialorder %v85, 0.0
    %v91 = vmul.f32 %v78, 0.01
    %v92 = vmul.f32 %v80, 0.01
    %v93 = vmul.f32 %v83, 0.01
    %v94 = vmul.f32 %v85, 0.01
    %v95 = vsel %vm87, %v78, %v91
    %v96 = vsel %vm88, %v80, %v92
    %v97 = vsel %vm89, %v83, %v93
    %v98 = vsel %vm90, %v85, %v94
    %v99 = vpack.c.bf16 %v96, %v95
    %v100 = vpack.c.bf16 %v98, %v97
    %v101 = vld [vmem:[%s2] sm:$0xf]
    %v102 = vld [vmem:[%s2 + $0x4] sm:$0xf]
    %v103 = vld [vmem:[%s2 + $0x8] sm:$0xf]
    %v104 = vld [vmem:[%s2 + $0xc] sm:$0xf]
    %v105 = vld [vmem:[%s3] sm:$0xff]
    %v106 = vld [vmem:[%s3 + $0x8] sm:$0xff]
    %v107 = vld [vmem:[%s3 + $0x10] sm:$0xff]
    %v108 = vld [vmem:[%s3 + $0x18] sm:$0xff]
    %110 = vset.pattern.permute.xlu0 0
    %111 = vperm.xlu0 %110, %v105
    %v112 = vpop.permute.xlu0 %111
    %115 = vset.pattern.permute.xlu0 0
    %116 = vperm.xlu0 %115, %v106
    %v117 = vpop.permute.xlu0 %116
    %120 = vset.pattern.permute.xlu0 0
    %121 = vperm.xlu0 %120, %v107
    %v122 = vpop.permute.xlu0 %121
    %125 = vset.pattern.permute.xlu0 0
    %126 = vperm.xlu0 %125, %v108
    %v127 = vpop.permute.xlu0 %126
    %v133 = vunpack.c.l.b16 %v101
    %v134 = vunpack.c.l.b16 %v102
    %v135 = vunpack.c.l.b16 %v103
    %v136 = vunpack.c.l.b16 %v104
    %v137 = vpack.c.b16 %v134, %v133
    %v138 = vpack.c.b16 %v136, %v135
    %vm139 = vcmask 261120
    %v141 = vsel %vm139, %v137, 0
    %v144 = vsel %vm139, %v138, 0
    %146 = vmatpush.bf16.msra.mxu0 0
    %147 = vmatpush.bf16.msra.mxu0 0
    %148 = vmatpush.bf16.msra.mxu0 0
    %149 = vmatpush.bf16.msra.mxu0 0
    %150 = vmatpush.bf16.msra.mxu0 0
    %151 = vmatpush.bf16.msra.mxu0 0
    %152 = vmatpush.bf16.msra.mxu0 %v100
    %153 = vmatpush.bf16.msra.mxu0 %v99
    %154 = vmatmul.bf16.gmra.mxu0 %v141
    %v155 = vpop.f32.mrf.mxu0
    %v156 = vadd.f32 %v112, %v155
    %v157 = vpop.f32.mrf.mxu0
    %v158 = vadd.f32 %v117, %v157
    %159 = vmatmul.bf16.gmra.mxu0 %v144
    %v160 = vpop.f32.mrf.mxu0
    %v161 = vadd.f32 %v122, %v160
    %v162 = vpop.f32.mrf.mxu0
    %v163 = vadd.f32 %v127, %v162
    %164 = vdwg.mxu0
    %vm165 = vcmp.gt.f32.partialorder %v156, 0.0
    %vm166 = vcmp.gt.f32.partialorder %v158, 0.0
    %vm167 = vcmp.gt.f32.partialorder %v161, 0.0
    %vm168 = vcmp.gt.f32.partialorder %v163, 0.0
    %v169 = vmul.f32 %v156, 0.01
    %v170 = vmul.f32 %v158, 0.01
    %v171 = vmul.f32 %v161, 0.01
    %v172 = vmul.f32 %v163, 0.01
    %v173 = vsel %vm165, %v156, %v169
    %v174 = vsel %vm166, %v158, %v170
    %v175 = vsel %vm167, %v161, %v171
    %v176 = vsel %vm168, %v163, %v172
    %v177 = vpack.c.bf16 %v174, %v173
    %v178 = vpack.c.bf16 %v176, %v175
    %v179 = vld [vmem:[%s4] sm:$0xf]
    %v180 = vld [vmem:[%s4 + $0x4] sm:$0xf]
    %v181 = vld [vmem:[%s4 + $0x8] sm:$0xf]
    %v182 = vld [vmem:[%s4 + $0xc] sm:$0xf]
    %v183 = vld [vmem:[%s5] sm:$0xff]
    %v184 = vld [vmem:[%s5 + $0x8] sm:$0xff]
    %v185 = vld [vmem:[%s5 + $0x10] sm:$0xff]
    %v186 = vld [vmem:[%s5 + $0x18] sm:$0xff]
    %188 = vset.pattern.permute.xlu0 0
    %189 = vperm.xlu0 %188, %v183
    %v190 = vpop.permute.xlu0 %189
    %193 = vset.pattern.permute.xlu0 0
    %194 = vperm.xlu0 %193, %v184
    %v195 = vpop.permute.xlu0 %194
    %198 = vset.pattern.permute.xlu0 0
    %199 = vperm.xlu0 %198, %v185
    %v200 = vpop.permute.xlu0 %199
    %203 = vset.pattern.permute.xlu0 0
    %204 = vperm.xlu0 %203, %v186
    %v205 = vpop.permute.xlu0 %204
    %v211 = vunpack.c.l.b16 %v179
    %v212 = vunpack.c.l.b16 %v180
    %v213 = vunpack.c.l.b16 %v181
    %v214 = vunpack.c.l.b16 %v182
    %v215 = vpack.c.b16 %v212, %v211
    %v216 = vpack.c.b16 %v214, %v213
    %v218 = vsel %vm139, %v215, 0
    %v221 = vsel %vm139, %v216, 0
    %223 = vmatpush.bf16.msra.mxu0 0
    %224 = vmatpush.bf16.msra.mxu0 0
    %225 = vmatpush.bf16.msra.mxu0 0
    %226 = vmatpush.bf16.msra.mxu0 0
    %227 = vmatpush.bf16.msra.mxu0 0
    %228 = vmatpush.bf16.msra.mxu0 0
    %229 = vmatpush.bf16.msra.mxu0 %v178
    %230 = vmatpush.bf16.msra.mxu0 %v177
    %231 = vmatmul.bf16.gmra.mxu0 %v218
    %v232 = vpop.f32.mrf.mxu0
    %v233 = vadd.f32 %v190, %v232
    %v234 = vpop.f32.mrf.mxu0
    %v235 = vadd.f32 %v195, %v234
    %236 = vmatmul.bf16.gmra.mxu0 %v221
    %v237 = vpop.f32.mrf.mxu0
    %v238 = vadd.f32 %v200, %v237
    %v239 = vpop.f32.mrf.mxu0
    %v240 = vadd.f32 %v205, %v239
    %241 = vdwg.mxu0
    %vm242 = vcmp.gt.f32.partialorder %v233, 0.0
    %vm243 = vcmp.gt.f32.partialorder %v235, 0.0
    %vm244 = vcmp.gt.f32.partialorder %v238, 0.0
    %vm245 = vcmp.gt.f32.partialorder %v240, 0.0
    %v246 = vmul.f32 %v233, 0.01
    %v247 = vmul.f32 %v235, 0.01
    %v248 = vmul.f32 %v238, 0.01
    %v249 = vmul.f32 %v240, 0.01
    %v250 = vsel %vm242, %v233, %v246
    %v251 = vsel %vm243, %v235, %v247
    %v252 = vsel %vm244, %v238, %v248
    %v253 = vsel %vm245, %v240, %v249
    %v254 = vpack.c.bf16 %v251, %v250
    %v255 = vpack.c.bf16 %v253, %v252
    %v256 = vld [vmem:[%s6] sm:$0x1]
    %v258 = vsel %vm139, %v256, 0
    %260 = vmatpush.bf16.msra.mxu0 0
    %261 = vmatpush.bf16.msra.mxu0 0
    %262 = vmatpush.bf16.msra.mxu0 0
    %263 = vmatpush.bf16.msra.mxu0 0
    %264 = vmatpush.bf16.msra.mxu0 0
    %265 = vmatpush.bf16.msra.mxu0 0
    %266 = vmatpush.bf16.msra.mxu0 %v255
    %267 = vmatpush.bf16.msra.mxu0 %v254
    %268 = vmatmul.bf16.gmra.mxu0 %v258
    %v269 = vpop.f32.mrf.mxu0
    %v270 = vadd.f32 0.0, %v269
    %v271 = vpop.f32.mrf.mxu0
    %272 = vdwg.mxu0
    %273 = vst [vmem:[#allocation2] sm:$0x1] %v270
    // Predicated region
    $region30: #{tpu_custom_call.1} parent=1 // pred_check
      _
    $region31: #{tpu_custom_call.1} parent=1 // pred_check_branch
      %275 = sbr.rel (0) target = $region33
    $region32: #{tpu_custom_call.1} parent=1 // pred_region
      %277 = vsyncadd [#allocation3], 0
      %s279 = sshll.u32 [#allocation2], 4
      %s280 = int_to_ptr.vmem [resolvable:$true] %s279
      %s281 = sshll.u32 %s7, 4
      %s282 = int_to_ptr.hbm [resolvable:$true] %s281
      %284 = dma.vmem_to_hbm [thread:$0]  %s280, 16, %s282, [#allocation3]
    $region33: #{tpu_custom_call.1} parent=1 // pred_fallthru
      _
    // Predicated region
    $region34: #{tpu_custom_call.1} parent=1 // pred_check
      _
    $region35: #{tpu_custom_call.1} parent=1 // pred_check_branch
      %286 = sbr.rel (0) target = $region37
    $region36: #{tpu_custom_call.1} parent=1 // pred_region
      %288 = dma.done [#allocation3], 16
    $region37: #{tpu_custom_call.1} parent=1 // pred_fallthru
      _
    %289 = vsyncpa [#allocation3], 1

</llo_original>
